<compile_context>
chip_gen: v5e
topology: v5e:2x2
jax: 0.10.0
libtpu: 0.0.40
codegen_flags: <defaults>
</compile_context>

<pallas_src>
import math
import functools

import jax
import jax.numpy as jnp
from jax.experimental import pallas as pl
from jax.experimental.pallas import tpu as pltpu

_EPS = 1e-5
_NEG = -1e30


def _layernorm(v, g, b):
    mu = jnp.mean(v, axis=-1, keepdims=True)
    var = jnp.mean((v - mu) ** 2, axis=-1, keepdims=True)
    return (v - mu) * jax.lax.rsqrt(var + _EPS) * g + b


def _mm(a, b):  # contract last dim of a with first dim of b (MXU, f32 accumulate)
    return jax.lax.dot_general(a, b, (((1,), (0,)), ((), ())),
                               preferred_element_type=jnp.float32)


# ---------------------------------------------------------------------------
# Kernel A: LayerNorm1 + fused Q / K|V projection (+ RoPE), once per token tile.
# ---------------------------------------------------------------------------
def qkv_kernel(x_ref, ln1g_ref, ln1b_ref, wq_ref, wkv_ref, mult_ref,
               q_ref, k_ref, v_ref, *, use_rope):
    H, hs = q_ref.shape[1], q_ref.shape[3]
    C = H * hs
    bf16 = jnp.bfloat16

    ln1 = _layernorm(x_ref[0], ln1g_ref[0], ln1b_ref[0]).astype(bf16)
    q_all = _mm(ln1, wq_ref[...])            # (TT, C)  rot + hs^-0.5 folded
    kv_all = _mm(ln1, wkv_ref[...])          # (TT, 2C) rot folded into K half
    mult = mult_ref[...]                     # (TT, hs) interleaved cos/sin

    # Write head-batched (H, TT, hs) bf16 layout for the attention kernel.
    for h in range(H):
        lo = h * hs
        q_h = q_all[:, lo:lo + hs]
        k_h = kv_all[:, lo:lo + hs]
        v_h = kv_all[:, C + lo:C + lo + hs]
        if use_rope:
            q_h = q_h * mult
            k_h = k_h * mult
        q_ref[0, h] = q_h.astype(bf16)
        k_ref[0, h] = k_h.astype(bf16)
        v_ref[0, h] = v_h.astype(bf16)


# ---------------------------------------------------------------------------
# Kernel B: flash-style causal attention + out-proj + residual + LN2 + FFN.
# Grid: (batch, query tile, key tile);  key tile axis is "arbitrary".
# ---------------------------------------------------------------------------
def attn_ffn_kernel(q_ref, k_ref, v_ref, x_ref, ln2g_ref, ln2b_ref,
                    wp_ref, bp_ref, w1_ref, b1_ref, w2_ref, b2_ref,
                    o_ref, m_sc, l_sc, acc_sc):
    H, TQ, hs = q_ref.shape[1], q_ref.shape[2], q_ref.shape[3]
    TK = k_ref.shape[2]
    bf16 = jnp.bfloat16
    qi = pl.program_id(1)
    kv = pl.program_id(2)

    @pl.when(kv == 0)
    def _():
        m_sc[...] = jnp.full(m_sc.shape, _NEG, jnp.float32)
        l_sc[...] = jnp.zeros(l_sc.shape, jnp.float32)
        acc_sc[...] = jnp.zeros(acc_sc.shape, jnp.float32)

    @pl.when(kv <= qi)                       # causal block skipping (TQ == TK)
    def _():
        q = q_ref[0]                         # (H, TQ, hs) bf16
        k = k_ref[0]                         # (H, TK, hs) bf16
        v = v_ref[0]                         # (H, TK, hs) bf16
        s = jax.lax.dot_general(q, k, (((2,), (2,)), ((0,), (0,))),
                                preferred_element_type=jnp.float32)   # (H,TQ,TK)
        row = qi * TQ + jax.lax.broadcasted_iota(jnp.int32, (H, TQ, TK), 1)
        col = kv * TK + jax.lax.broadcasted_iota(jnp.int32, (H, TQ, TK), 2)
        s = jnp.where(row >= col, s, _NEG)   # mask merged, applied BEFORE the max
        m_prev = m_sc[...]
        m_new = jnp.maximum(m_prev, jnp.max(s, axis=-1, keepdims=True))
        alpha = jnp.exp(m_prev - m_new)
        p = jnp.exp(s - m_new)
        l_sc[...] = alpha * l_sc[...] + jnp.sum(p, axis=-1, keepdims=True)
        pv = jax.lax.dot_general(p.astype(bf16), v, (((2,), (1,)), ((0,), (0,))),
                                 preferred_element_type=jnp.float32)  # (H,TQ,hs)
        acc_sc[...] = alpha * acc_sc[...] + pv
        m_sc[...] = m_new

    # Finalize at the diagonal key tile (last contributing block for this q tile).
    @pl.when(kv == qi)
    def _():
        ctx = acc_sc[...] * pl.reciprocal(l_sc[...], approx=True)     # (H,TQ,hs)
        cat = jnp.concatenate([ctx[h] for h in range(H)], axis=-1).astype(bf16)
        sa = _mm(cat, wp_ref[...]) + bp_ref[0]                        # (TQ, C)
        x1 = x_ref[0] + sa
        ln2 = _layernorm(x1, ln2g_ref[0], ln2b_ref[0]).astype(bf16)
        hdn = jnp.maximum(_mm(ln2, w1_ref[...]) + b1_ref[0], 0.0)     # (TQ, 4C)
        ff = _mm(hdn.astype(bf16), w2_ref[...]) + b2_ref[0]           # (TQ, C)
        o_ref[0] = x1 + ff
    # TODO(synk): nn.Dropout layers are treated as identity (eval-mode semantics).


# ---------------------------------------------------------------------------
# Wrappers
# ---------------------------------------------------------------------------
def _qkv_forward(x, kp, *, n_head, head_size, use_rope, t_tile):
    B, T, C = x.shape
    H, hs = n_head, head_size
    nt = T // t_tile
    const2 = lambda b, t: (0, 0)
    qkv_map = lambda b, t: (b, 0, t, 0)
    out_sds = jax.ShapeDtypeStruct((B, H, T, hs), jnp.bfloat16)
    return pl.pallas_call(
        functools.partial(qkv_kernel, use_rope=use_rope),
        out_shape=(out_sds, out_sds, out_sds),
        grid_spec=pltpu.PrefetchScalarGridSpec(
            num_scalar_prefetch=0,
            grid=(B, nt),
            in_specs=[
                pl.BlockSpec((1, t_tile, C), lambda b, t: (b, t, 0)),  # x
                pl.BlockSpec((1, C), const2),                          # ln1 gamma
                pl.BlockSpec((1, C), const2),                          # ln1 beta
                pl.BlockSpec((C, C), const2),                          # Wq (rot+scale folded)
                pl.BlockSpec((C, 2 * C), const2),                      # Wk|Wv fused
                pl.BlockSpec((t_tile, hs), lambda b, t: (t, 0)),       # rope cos/sin (T, hs)
            ],
            out_specs=(pl.BlockSpec((1, H, t_tile, hs), qkv_map),      # Q
                       pl.BlockSpec((1, H, t_tile, hs), qkv_map),      # K
                       pl.BlockSpec((1, H, t_tile, hs), qkv_map)),     # V
        ),
        compiler_params=pltpu.CompilerParams(
            dimension_semantics=("parallel", "parallel"),
            vmem_limit_bytes=48 * 1024 * 1024),
    )(x, kp["ln1g"], kp["ln1b"], kp["wq"], kp["wkv"], kp["mult"])


def _attn_ffn_forward(x, q, k, v, kp, *, n_head, head_size, q_tile):
    B, T, C = x.shape
    H, hs = n_head, head_size
    nq = T // q_tile
    const2 = lambda b, qi, kv: (0, 0)
    # Clamp key-tile index to the diagonal: masked-out tiles reuse the previous
    # block index, so their DMA is elided; compute is skipped via pl.when.
    kv_map = lambda b, qi, kv: (b, 0, jnp.minimum(kv, qi), 0)
    return pl.pallas_call(
        attn_ffn_kernel,
        out_shape=jax.ShapeDtypeStruct((B, T, C), jnp.float32),
        grid_spec=pltpu.PrefetchScalarGridSpec(
            num_scalar_prefetch=0,
            grid=(B, nq, nq),
            in_specs=[
                pl.BlockSpec((1, H, q_tile, hs), lambda b, qi, kv: (b, 0, qi, 0)),  # Q
                pl.BlockSpec((1, H, q_tile, hs), kv_map),                           # K
                pl.BlockSpec((1, H, q_tile, hs), kv_map),                           # V
                pl.BlockSpec((1, q_tile, C), lambda b, qi, kv: (b, qi, 0)),         # x (residual)
                pl.BlockSpec((1, C), const2),                                       # ln2 gamma
                pl.BlockSpec((1, C), const2),                                       # ln2 beta
                pl.BlockSpec((C, C), const2),                                       # Wproj
                pl.BlockSpec((1, C), const2),                                       # bproj
                pl.BlockSpec((C, 4 * C), const2),                                   # ffn W1
                pl.BlockSpec((1, 4 * C), const2),                                   # ffn b1
                pl.BlockSpec((4 * C, C), const2),                                   # ffn W2
                pl.BlockSpec((1, C), const2),                                       # ffn b2
            ],
            out_specs=pl.BlockSpec((1, q_tile, C), lambda b, qi, kv: (b, qi, 0)),
            scratch_shapes=[
                pltpu.VMEM((H, q_tile, 1), jnp.float32),    # running row max
                pltpu.VMEM((H, q_tile, 1), jnp.float32),    # running denominator
                pltpu.VMEM((H, q_tile, hs), jnp.float32),   # running PV accumulator
            ]),
        compiler_params=pltpu.CompilerParams(
            dimension_semantics=("parallel", "parallel", "arbitrary"),
            vmem_limit_bytes=48 * 1024 * 1024),
    )(q, k, v, x, kp["ln2g"], kp["ln2b"], kp["wp"], kp["bp"],
      kp["w1"], kp["b1"], kp["w2"], kp["b2"])


def block_forward(x, kp, *, n_head, head_size, use_rope, q_tile=None):
    B, T, C = x.shape
    assert C == n_head * head_size
    if q_tile is None:
        q_tile = min(T, 128)
    assert T % q_tile == 0
    q, k, v = _qkv_forward(x, kp, n_head=n_head, head_size=head_size,
                           use_rope=use_rope, t_tile=q_tile)
    return _attn_ffn_forward(x, q, k, v, kp, n_head=n_head,
                             head_size=head_size, q_tile=q_tile)


# ---------------------------------------------------------------------------
# RoPE tables / parameter construction (deterministic)
# ---------------------------------------------------------------------------
def sinusoidal_embeddings(n_positions, dim):
    pos = jnp.arange(n_positions, dtype=jnp.float32)[:, None]
    div = jnp.exp(jnp.arange(0, dim, 2, dtype=jnp.float32) * (-math.log(10000.0) / dim))
    emb = jnp.zeros((n_positions, dim), jnp.float32)
    emb = emb.at[:, 0::2].set(jnp.sin(pos * div))
    emb = emb.at[:, 1::2].set(jnp.cos(pos * div))
    return emb


def make_rope_tables(T, hs):
    emb = sinusoidal_embeddings(T, hs)
    sin_half = emb[:, : hs // 2]          # torch .chunk(2, dim=-1) first half
    cos_half = emb[:, hs // 2:]           # second half
    mult = jnp.zeros((T, hs), jnp.float32)
    mult = mult.at[:, 0::2].set(cos_half)
    mult = mult.at[:, 1::2].set(sin_half)
    rot = jnp.zeros((hs, hs), jnp.float32)
    idx = jnp.arange(hs // 2)
    rot = rot.at[2 * idx + 1, 2 * idx].set(-1.0)   # q_new[:,2i]   = -q[:,2i+1] * cos
    rot = rot.at[2 * idx, 2 * idx + 1].set(1.0)    # q_new[:,2i+1] =  q[:,2i]   * sin
    return emb, rot, mult


def make_params(key, C, H, hs, T):
    ks = jax.random.split(key, 8)
    s = 0.02
    emb, _, _ = make_rope_tables(T, hs)
    return {
        "ln1g": jnp.ones((1, C), jnp.float32),
        "ln1b": jnp.zeros((1, C), jnp.float32),
        "wq": s * jax.random.normal(ks[0], (H, C, hs), jnp.float32),
        "wk": s * jax.random.normal(ks[1], (H, C, hs), jnp.float32),
        "wv": s * jax.random.normal(ks[2], (H, C, hs), jnp.float32),
        "wp": s * jax.random.normal(ks[3], (C, C), jnp.float32),
        "bp": s * jax.random.normal(ks[4], (1, C), jnp.float32),
        "ln2g": jnp.ones((1, C), jnp.float32),
        "ln2b": jnp.zeros((1, C), jnp.float32),
        "w1": s * jax.random.normal(ks[5], (C, 4 * C), jnp.float32),
        "b1": s * jax.random.normal(ks[6], (1, 4 * C), jnp.float32),
        "w2": s * jax.random.normal(ks[7], (4 * C, C), jnp.float32),
        "b2": jnp.zeros((1, C), jnp.float32),
        "emb": emb,
    }


def fold_params(raw, *, n_head, head_size, seq_len, use_rope):
    """Fold RoPE rotation + softmax scale into weights, fuse per-head weights,
    cast matmul weights to bf16.  The RoPE table stays (T, hs)."""
    H, hs, T = n_head, head_size, seq_len
    C = H * hs
    _, rot, mult = make_rope_tables(T, hs)
    scale = float(hs) ** (-0.5)
    wq, wk, wv = raw["wq"], raw["wk"], raw["wv"]          # (H, C, hs)
    if use_rope:
        wq = jnp.einsum("hcd,de->hce", wq, rot)
        wk = jnp.einsum("hcd,de->hce", wk, rot)
    wq = wq * scale
    fuse = lambda w: jnp.transpose(w, (1, 0, 2)).reshape(C, C)   # columns = concat heads
    wq_f = fuse(wq)
    wkv = jnp.concatenate([fuse(wk), fuse(wv)], axis=1)          # (C, 2C)
    bf = jnp.bfloat16
    return {
        "ln1g": raw["ln1g"], "ln1b": raw["ln1b"],
        "wq": wq_f.astype(bf), "wkv": wkv.astype(bf),
        "wp": raw["wp"].astype(bf), "bp": raw["bp"],
        "ln2g": raw["ln2g"], "ln2b": raw["ln2b"],
        "w1": raw["w1"].astype(bf), "b1": raw["b1"],
        "w2": raw["w2"].astype(bf), "b2": raw["b2"],
        "mult": mult,                                            # (T, hs) f32
    }


# ---------------------------------------------------------------------------
# Pure-JAX reference (mirrors the PyTorch code, dropout = identity, f32)
# ---------------------------------------------------------------------------
def ref_block(x, p, n_head, hs, use_rope):
    def ln(v, g, b):
        mu = v.mean(-1, keepdims=True)
        var = ((v - mu) ** 2).mean(-1, keepdims=True)
        return (v - mu) / jnp.sqrt(var + 1e-5) * g[0] + b[0]

    def rope(emb, q):
        d = q.shape[-1]
        sin, cos = emb[:, : d // 2], emb[:, d // 2:]
        q_rot = jnp.stack((-q[..., 1::2], q[..., 0::2]), axis=-1)   # (B,T,d/2,2)
        sc = jnp.stack((cos, sin), axis=-1)                         # (T,d/2,2)
        return (q_rot * sc).reshape(q.shape)

    B, T, C = x.shape
    ln1 = ln(x, p["ln1g"], p["ln1b"])
    mask = jnp.tril(jnp.ones((T, T))) == 0
    heads = []
    for h in range(n_head):
        q, k, v = ln1 @ p["wq"][h], ln1 @ p["wk"][h], ln1 @ p["wv"][h]
        if use_rope:
            q, k = rope(p["emb"], q), rope(p["emb"], k)
        wei = (q @ jnp.swapaxes(k, -1, -2)) * hs ** (-0.5)
        wei = jnp.where(mask, -jnp.inf, wei)
        heads.append(jax.nn.softmax(wei, axis=-1) @ v)
    cat = jnp.concatenate(heads, axis=-1)
    sa = cat @ p["wp"] + p["bp"][0]
    x1 = x + sa
    ln2 = ln(x1, p["ln2g"], p["ln2b"])
    ff = jnp.maximum(ln2 @ p["w1"] + p["b1"][0], 0.0) @ p["w2"] + p["b2"][0]
    return x1 + ff


# ---------------------------------------------------------------------------
if __name__ == "__main__":
    B, T = 2, 16
    C, H = 32, 4          # small stand-in for N_EMBD=384, n_head
    hs = C // H
    use_rope = True       # pos_encoding == 'rope'
    q_tile = 8            # T // q_tile = 2 tiles -> exercises causal block skipping

    key = jax.random.PRNGKey(0)
    kx, kparam = jax.random.split(key)
    x = jax.random.normal(kx, (B, T, C), jnp.float32)

    raw = make_params(kparam, C, H, hs, T)
    kp = fold_params(raw, n_head=H, head_size=hs, seq_len=T, use_rope=use_rope)

    out = block_forward(x, kp, n_head=H, head_size=hs, use_rope=use_rope, q_tile=q_tile)
    out = jax.block_until_ready(out)

    ref = ref_block(x, raw, H, hs, use_rope)
    assert out.shape == (B, T, C)
    err = float(jnp.max(jnp.abs(out - ref)))
    assert jnp.allclose(out, ref, atol=2e-2, rtol=2e-2), err
    print("KERNEL_OK")
</pallas_src>

<mosaic_0001>
module attributes {stable_mosaic.version = 11 : i64} {
  func.func @qkv_kernel(%arg0: i32, %arg1: i32, %arg2: memref<1x8x32xf32, #tpu.memory_space<vmem>>, %arg3: memref<1x32xf32, #tpu.memory_space<vmem>>, %arg4: memref<1x32xf32, #tpu.memory_space<vmem>>, %arg5: memref<32x32xbf16, #tpu.memory_space<vmem>>, %arg6: memref<32x64xbf16, #tpu.memory_space<vmem>>, %arg7: memref<8x8xf32, #tpu.memory_space<vmem>>, %arg8: memref<1x4x8x8xbf16, #tpu.memory_space<vmem>>, %arg9: memref<1x4x8x8xbf16, #tpu.memory_space<vmem>>, %arg10: memref<1x4x8x8xbf16, #tpu.memory_space<vmem>>) attributes {dimension_semantics = [#tpu.dimension_semantics<parallel>, #tpu.dimension_semantics<parallel>], iteration_bounds = array<i64: 2, 2>, scalar_prefetch = 0 : i64, scratch_operands = 0 : i64, tpu.core_type = #tpu.core_type<tc>, window_params = [{transform_indices = @transform_0, window_bounds = array<i64: 1, 8, 32>}, {pipeline_mode = #tpu.pipeline_mode<synchronous>, transform_indices = @transform_1, window_bounds = array<i64: 1, 32>}, {pipeline_mode = #tpu.pipeline_mode<synchronous>, transform_indices = @transform_2, window_bounds = array<i64: 1, 32>}, {pipeline_mode = #tpu.pipeline_mode<synchronous>, transform_indices = @transform_3, window_bounds = array<i64: 32, 32>}, {pipeline_mode = #tpu.pipeline_mode<synchronous>, transform_indices = @transform_4, window_bounds = array<i64: 32, 64>}, {transform_indices = @transform_5, window_bounds = array<i64: 8, 8>}, {transform_indices = @transform_6, window_bounds = array<i64: 1, 4, 8, 8>}, {transform_indices = @transform_7, window_bounds = array<i64: 1, 4, 8, 8>}, {transform_indices = @transform_8, window_bounds = array<i64: 1, 4, 8, 8>}]} {
    %c0 = arith.constant 0 : index
    %c0_0 = arith.constant 0 : index
    %c0_1 = arith.constant 0 : index
    %0 = vector.load %arg2[%c0, %c0_0, %c0_1] : memref<1x8x32xf32, #tpu.memory_space<vmem>>, vector<1x8x32xf32>
    %1 = vector.shape_cast %0 : vector<1x8x32xf32> to vector<8x32xf32>
    %c0_2 = arith.constant 0 : index
    %c0_3 = arith.constant 0 : index
    %2 = vector.load %arg3[%c0_2, %c0_3] : memref<1x32xf32, #tpu.memory_space<vmem>>, vector<1x32xf32>
    %3 = vector.shape_cast %2 : vector<1x32xf32> to vector<32xf32>
    %c0_4 = arith.constant 0 : index
    %c0_5 = arith.constant 0 : index
    %4 = vector.load %arg4[%c0_4, %c0_5] : memref<1x32xf32, #tpu.memory_space<vmem>>, vector<1x32xf32>
    %5 = vector.shape_cast %4 : vector<1x32xf32> to vector<32xf32>
    %cst = arith.constant dense<0.000000e+00> : vector<8xf32>
    %6 = vector.multi_reduction <add>, %1, %cst [1] : vector<8x32xf32> to vector<8xf32>
    %7 = vector.shape_cast %6 : vector<8xf32> to vector<8x1xf32>
    %cst_6 = arith.constant 3.200000e+01 : f32
    %8 = vector.broadcast %cst_6 : f32 to vector<8x1xf32>
    %9 = arith.divf %7, %8 : vector<8x1xf32>
    %10 = vector.broadcast %9 : vector<8x1xf32> to vector<8x32xf32>
    %11 = arith.subf %1, %10 : vector<8x32xf32>
    %12 = arith.mulf %11, %11 : vector<8x32xf32>
    %cst_7 = arith.constant dense<0.000000e+00> : vector<8xf32>
    %13 = vector.multi_reduction <add>, %12, %cst_7 [1] : vector<8x32xf32> to vector<8xf32>
    %14 = vector.shape_cast %13 : vector<8xf32> to vector<8x1xf32>
    %cst_8 = arith.constant 3.200000e+01 : f32
    %15 = vector.broadcast %cst_8 : f32 to vector<8x1xf32>
    %16 = arith.divf %14, %15 : vector<8x1xf32>
    %17 = vector.broadcast %9 : vector<8x1xf32> to vector<8x32xf32>
    %18 = arith.subf %1, %17 : vector<8x32xf32>
    %cst_9 = arith.constant 9.99999974E-6 : f32
    %19 = vector.broadcast %cst_9 : f32 to vector<8x1xf32>
    %20 = arith.addf %16, %19 : vector<8x1xf32>
    %21 = math.rsqrt %20 : vector<8x1xf32>
    %22 = vector.broadcast %21 : vector<8x1xf32> to vector<8x32xf32>
    %23 = arith.mulf %18, %22 : vector<8x32xf32>
    %24 = vector.shape_cast %3 : vector<32xf32> to vector<1x32xf32>
    %25 = vector.broadcast %24 : vector<1x32xf32> to vector<8x32xf32>
    %26 = arith.mulf %23, %25 : vector<8x32xf32>
    %27 = vector.shape_cast %5 : vector<32xf32> to vector<1x32xf32>
    %28 = vector.broadcast %27 : vector<1x32xf32> to vector<8x32xf32>
    %29 = arith.addf %26, %28 : vector<8x32xf32>
    %30 = arith.truncf %29 : vector<8x32xf32> to vector<8x32xbf16>
    %c0_10 = arith.constant 0 : index
    %c0_11 = arith.constant 0 : index
    %31 = vector.load %arg5[%c0_10, %c0_11] : memref<32x32xbf16, #tpu.memory_space<vmem>>, vector<32x32xbf16>
    %cst_12 = arith.constant dense<0.000000e+00> : vector<8x32xf32>
    %32 = tpu.matmul %30, %31, %cst_12 {dimension_numbers = #tpu.dot_dimension_numbers<[1], [0], [0], [1], [0, 0, 1, 1], [], []>} : vector<8x32xbf16>, vector<32x32xbf16>, vector<8x32xf32> -> vector<8x32xf32>
    %c0_13 = arith.constant 0 : index
    %c0_14 = arith.constant 0 : index
    %33 = vector.load %arg6[%c0_13, %c0_14] : memref<32x64xbf16, #tpu.memory_space<vmem>>, vector<32x64xbf16>
    %cst_15 = arith.constant dense<0.000000e+00> : vector<8x64xf32>
    %34 = tpu.matmul %30, %33, %cst_15 {dimension_numbers = #tpu.dot_dimension_numbers<[1], [0], [0], [1], [0, 0, 1, 1], [], []>} : vector<8x32xbf16>, vector<32x64xbf16>, vector<8x64xf32> -> vector<8x64xf32>
    %c0_16 = arith.constant 0 : index
    %c0_17 = arith.constant 0 : index
    %35 = vector.load %arg7[%c0_16, %c0_17] : memref<8x8xf32, #tpu.memory_space<vmem>>, vector<8x8xf32>
    %36 = vector.extract_strided_slice %32 {offsets = [0, 0], sizes = [8, 8], strides = [1, 1]} : vector<8x32xf32> to vector<8x8xf32>
    %37 = vector.extract_strided_slice %34 {offsets = [0, 0], sizes = [8, 8], strides = [1, 1]} : vector<8x64xf32> to vector<8x8xf32>
    %38 = vector.extract_strided_slice %34 {offsets = [0, 32], sizes = [8, 8], strides = [1, 1]} : vector<8x64xf32> to vector<8x8xf32>
    %39 = arith.mulf %36, %35 : vector<8x8xf32>
    %40 = arith.mulf %37, %35 : vector<8x8xf32>
    %41 = arith.truncf %39 : vector<8x8xf32> to vector<8x8xbf16>
    %c0_18 = arith.constant 0 : index
    %c0_19 = arith.constant 0 : index
    %c0_20 = arith.constant 0 : index
    %c0_21 = arith.constant 0 : index
    %42 = vector.load %arg8[%c0_18, %c0_19, %c0_20, %c0_21] : memref<1x4x8x8xbf16, #tpu.memory_space<vmem>>, vector<1x1x8x8xbf16>
    %43 = vector.shape_cast %42 : vector<1x1x8x8xbf16> to vector<8x8xbf16>
    %44 = vector.shape_cast %41 : vector<8x8xbf16> to vector<1x1x8x8xbf16>
    tpu.vector_store %arg8[%c0_18, %c0_19, %c0_20, %c0_21], %44 {strides = array<i32>} : memref<1x4x8x8xbf16, #tpu.memory_space<vmem>>, vector<1x1x8x8xbf16>,
    %45 = arith.truncf %40 : vector<8x8xf32> to vector<8x8xbf16>
    %c0_22 = arith.constant 0 : index
    %c0_23 = arith.constant 0 : index
    %c0_24 = arith.constant 0 : index
    %c0_25 = arith.constant 0 : index
    %46 = vector.load %arg9[%c0_22, %c0_23, %c0_24, %c0_25] : memref<1x4x8x8xbf16, #tpu.memory_space<vmem>>, vector<1x1x8x8xbf16>
    %47 = vector.shape_cast %46 : vector<1x1x8x8xbf16> to vector<8x8xbf16>
    %48 = vector.shape_cast %45 : vector<8x8xbf16> to vector<1x1x8x8xbf16>
    tpu.vector_store %arg9[%c0_22, %c0_23, %c0_24, %c0_25], %48 {strides = array<i32>} : memref<1x4x8x8xbf16, #tpu.memory_space<vmem>>, vector<1x1x8x8xbf16>,
    %49 = arith.truncf %38 : vector<8x8xf32> to vector<8x8xbf16>
    %c0_26 = arith.constant 0 : index
    %c0_27 = arith.constant 0 : index
    %c0_28 = arith.constant 0 : index
    %c0_29 = arith.constant 0 : index
    %50 = vector.load %arg10[%c0_26, %c0_27, %c0_28, %c0_29] : memref<1x4x8x8xbf16, #tpu.memory_space<vmem>>, vector<1x1x8x8xbf16>
    %51 = vector.shape_cast %50 : vector<1x1x8x8xbf16> to vector<8x8xbf16>
    %52 = vector.shape_cast %49 : vector<8x8xbf16> to vector<1x1x8x8xbf16>
    tpu.vector_store %arg10[%c0_26, %c0_27, %c0_28, %c0_29], %52 {strides = array<i32>} : memref<1x4x8x8xbf16, #tpu.memory_space<vmem>>, vector<1x1x8x8xbf16>,
    %53 = vector.extract_strided_slice %32 {offsets = [0, 8], sizes = [8, 8], strides = [1, 1]} : vector<8x32xf32> to vector<8x8xf32>
    %54 = vector.extract_strided_slice %34 {offsets = [0, 8], sizes = [8, 8], strides = [1, 1]} : vector<8x64xf32> to vector<8x8xf32>
    %55 = vector.extract_strided_slice %34 {offsets = [0, 40], sizes = [8, 8], strides = [1, 1]} : vector<8x64xf32> to vector<8x8xf32>
    %56 = arith.mulf %53, %35 : vector<8x8xf32>
    %57 = arith.mulf %54, %35 : vector<8x8xf32>
    %58 = arith.truncf %56 : vector<8x8xf32> to vector<8x8xbf16>
    %c0_30 = arith.constant 0 : index
    %c1 = arith.constant 1 : index
    %c0_31 = arith.constant 0 : index
    %c0_32 = arith.constant 0 : index
    %59 = vector.load %arg8[%c0_30, %c1, %c0_31, %c0_32] : memref<1x4x8x8xbf16, #tpu.memory_space<vmem>>, vector<1x1x8x8xbf16>
    %60 = vector.shape_cast %59 : vector<1x1x8x8xbf16> to vector<8x8xbf16>
    %61 = vector.shape_cast %58 : vector<8x8xbf16> to vector<1x1x8x8xbf16>
    tpu.vector_store %arg8[%c0_30, %c1, %c0_31, %c0_32], %61 {strides = array<i32>} : memref<1x4x8x8xbf16, #tpu.memory_space<vmem>>, vector<1x1x8x8xbf16>,
    %62 = arith.truncf %57 : vector<8x8xf32> to vector<8x8xbf16>
    %c0_33 = arith.constant 0 : index
    %c1_34 = arith.constant 1 : index
    %c0_35 = arith.constant 0 : index
    %c0_36 = arith.constant 0 : index
    %63 = vector.load %arg9[%c0_33, %c1_34, %c0_35, %c0_36] : memref<1x4x8x8xbf16, #tpu.memory_space<vmem>>, vector<1x1x8x8xbf16>
    %64 = vector.shape_cast %63 : vector<1x1x8x8xbf16> to vector<8x8xbf16>
    %65 = vector.shape_cast %62 : vector<8x8xbf16> to vector<1x1x8x8xbf16>
    tpu.vector_store %arg9[%c0_33, %c1_34, %c0_35, %c0_36], %65 {strides = array<i32>} : memref<1x4x8x8xbf16, #tpu.memory_space<vmem>>, vector<1x1x8x8xbf16>,
    %66 = arith.truncf %55 : vector<8x8xf32> to vector<8x8xbf16>
    %c0_37 = arith.constant 0 : index
    %c1_38 = arith.constant 1 : index
    %c0_39 = arith.constant 0 : index
    %c0_40 = arith.constant 0 : index
    %67 = vector.load %arg10[%c0_37, %c1_38, %c0_39, %c0_40] : memref<1x4x8x8xbf16, #tpu.memory_space<vmem>>, vector<1x1x8x8xbf16>
    %68 = vector.shape_cast %67 : vector<1x1x8x8xbf16> to vector<8x8xbf16>
    %69 = vector.shape_cast %66 : vector<8x8xbf16> to vector<1x1x8x8xbf16>
    tpu.vector_store %arg10[%c0_37, %c1_38, %c0_39, %c0_40], %69 {strides = array<i32>} : memref<1x4x8x8xbf16, #tpu.memory_space<vmem>>, vector<1x1x8x8xbf16>,
    %70 = vector.extract_strided_slice %32 {offsets = [0, 16], sizes = [8, 8], strides = [1, 1]} : vector<8x32xf32> to vector<8x8xf32>
    %71 = vector.extract_strided_slice %34 {offsets = [0, 16], sizes = [8, 8], strides = [1, 1]} : vector<8x64xf32> to vector<8x8xf32>
    %72 = vector.extract_strided_slice %34 {offsets = [0, 48], sizes = [8, 8], strides = [1, 1]} : vector<8x64xf32> to vector<8x8xf32>
    %73 = arith.mulf %70, %35 : vector<8x8xf32>
    %74 = arith.mulf %71, %35 : vector<8x8xf32>
    %75 = arith.truncf %73 : vector<8x8xf32> to vector<8x8xbf16>
    %c0_41 = arith.constant 0 : index
    %c2 = arith.constant 2 : index
    %c0_42 = arith.constant 0 : index
    %c0_43 = arith.constant 0 : index
    %76 = vector.load %arg8[%c0_41, %c2, %c0_42, %c0_43] : memref<1x4x8x8xbf16, #tpu.memory_space<vmem>>, vector<1x1x8x8xbf16>
    %77 = vector.shape_cast %76 : vector<1x1x8x8xbf16> to vector<8x8xbf16>
    %78 = vector.shape_cast %75 : vector<8x8xbf16> to vector<1x1x8x8xbf16>
    tpu.vector_store %arg8[%c0_41, %c2, %c0_42, %c0_43], %78 {strides = array<i32>} : memref<1x4x8x8xbf16, #tpu.memory_space<vmem>>, vector<1x1x8x8xbf16>,
    %79 = arith.truncf %74 : vector<8x8xf32> to vector<8x8xbf16>
    %c0_44 = arith.constant 0 : index
    %c2_45 = arith.constant 2 : index
    %c0_46 = arith.constant 0 : index
    %c0_47 = arith.constant 0 : index
    %80 = vector.load %arg9[%c0_44, %c2_45, %c0_46, %c0_47] : memref<1x4x8x8xbf16, #tpu.memory_space<vmem>>, vector<1x1x8x8xbf16>
    %81 = vector.shape_cast %80 : vector<1x1x8x8xbf16> to vector<8x8xbf16>
    %82 = vector.shape_cast %79 : vector<8x8xbf16> to vector<1x1x8x8xbf16>
    tpu.vector_store %arg9[%c0_44, %c2_45, %c0_46, %c0_47], %82 {strides = array<i32>} : memref<1x4x8x8xbf16, #tpu.memory_space<vmem>>, vector<1x1x8x8xbf16>,
    %83 = arith.truncf %72 : vector<8x8xf32> to vector<8x8xbf16>
    %c0_48 = arith.constant 0 : index
    %c2_49 = arith.constant 2 : index
    %c0_50 = arith.constant 0 : index
    %c0_51 = arith.constant 0 : index
    %84 = vector.load %arg10[%c0_48, %c2_49, %c0_50, %c0_51] : memref<1x4x8x8xbf16, #tpu.memory_space<vmem>>, vector<1x1x8x8xbf16>
    %85 = vector.shape_cast %84 : vector<1x1x8x8xbf16> to vector<8x8xbf16>
    %86 = vector.shape_cast %83 : vector<8x8xbf16> to vector<1x1x8x8xbf16>
    tpu.vector_store %arg10[%c0_48, %c2_49, %c0_50, %c0_51], %86 {strides = array<i32>} : memref<1x4x8x8xbf16, #tpu.memory_space<vmem>>, vector<1x1x8x8xbf16>,
    %87 = vector.extract_strided_slice %32 {offsets = [0, 24], sizes = [8, 8], strides = [1, 1]} : vector<8x32xf32> to vector<8x8xf32>
    %88 = vector.extract_strided_slice %34 {offsets = [0, 24], sizes = [8, 8], strides = [1, 1]} : vector<8x64xf32> to vector<8x8xf32>
    %89 = vector.extract_strided_slice %34 {offsets = [0, 56], sizes = [8, 8], strides = [1, 1]} : vector<8x64xf32> to vector<8x8xf32>
    %90 = arith.mulf %87, %35 : vector<8x8xf32>
    %91 = arith.mulf %88, %35 : vector<8x8xf32>
    %92 = arith.truncf %90 : vector<8x8xf32> to vector<8x8xbf16>
    %c0_52 = arith.constant 0 : index
    %c3 = arith.constant 3 : index
    %c0_53 = arith.constant 0 : index
    %c0_54 = arith.constant 0 : index
    %93 = vector.load %arg8[%c0_52, %c3, %c0_53, %c0_54] : memref<1x4x8x8xbf16, #tpu.memory_space<vmem>>, vector<1x1x8x8xbf16>
    %94 = vector.shape_cast %93 : vector<1x1x8x8xbf16> to vector<8x8xbf16>
    %95 = vector.shape_cast %92 : vector<8x8xbf16> to vector<1x1x8x8xbf16>
    tpu.vector_store %arg8[%c0_52, %c3, %c0_53, %c0_54], %95 {strides = array<i32>} : memref<1x4x8x8xbf16, #tpu.memory_space<vmem>>, vector<1x1x8x8xbf16>,
    %96 = arith.truncf %91 : vector<8x8xf32> to vector<8x8xbf16>
    %c0_55 = arith.constant 0 : index
    %c3_56 = arith.constant 3 : index
    %c0_57 = arith.constant 0 : index
    %c0_58 = arith.constant 0 : index
    %97 = vector.load %arg9[%c0_55, %c3_56, %c0_57, %c0_58] : memref<1x4x8x8xbf16, #tpu.memory_space<vmem>>, vector<1x1x8x8xbf16>
    %98 = vector.shape_cast %97 : vector<1x1x8x8xbf16> to vector<8x8xbf16>
    %99 = vector.shape_cast %96 : vector<8x8xbf16> to vector<1x1x8x8xbf16>
    tpu.vector_store %arg9[%c0_55, %c3_56, %c0_57, %c0_58], %99 {strides = array<i32>} : memref<1x4x8x8xbf16, #tpu.memory_space<vmem>>, vector<1x1x8x8xbf16>,
    %100 = arith.truncf %89 : vector<8x8xf32> to vector<8x8xbf16>
    %c0_59 = arith.constant 0 : index
    %c3_60 = arith.constant 3 : index
    %c0_61 = arith.constant 0 : index
    %c0_62 = arith.constant 0 : index
    %101 = vector.load %arg10[%c0_59, %c3_60, %c0_61, %c0_62] : memref<1x4x8x8xbf16, #tpu.memory_space<vmem>>, vector<1x1x8x8xbf16>
    %102 = vector.shape_cast %101 : vector<1x1x8x8xbf16> to vector<8x8xbf16>
    %103 = vector.shape_cast %100 : vector<8x8xbf16> to vector<1x1x8x8xbf16>
    tpu.vector_store %arg10[%c0_59, %c3_60, %c0_61, %c0_62], %103 {strides = array<i32>} : memref<1x4x8x8xbf16, #tpu.memory_space<vmem>>, vector<1x1x8x8xbf16>,
    return
  }
  func.func @transform_0(%arg0: i32, %arg1: i32) -> (i32, i32, i32) {
    %c0_i32 = arith.constant 0 : i32
    %c0_i32_0 = arith.constant 0 : i32
    return %arg0, %arg1, %c0_i32 : i32, i32, i32
  }
  func.func @transform_1(%arg0: i32, %arg1: i32) -> (i32, i32) {
    %c0_i32 = arith.constant 0 : i32
    %c0_i32_0 = arith.constant 0 : i32
    %c0_i32_1 = arith.constant 0 : i32
    return %c0_i32, %c0_i32_0 : i32, i32
  }
  func.func @transform_2(%arg0: i32, %arg1: i32) -> (i32, i32) {
    %c0_i32 = arith.constant 0 : i32
    %c0_i32_0 = arith.constant 0 : i32
    %c0_i32_1 = arith.constant 0 : i32
    return %c0_i32, %c0_i32_0 : i32, i32
  }
  func.func @transform_3(%arg0: i32, %arg1: i32) -> (i32, i32) {
    %c0_i32 = arith.constant 0 : i32
    %c0_i32_0 = arith.constant 0 : i32
    %c0_i32_1 = arith.constant 0 : i32
    return %c0_i32, %c0_i32_0 : i32, i32
  }
  func.func @transform_4(%arg0: i32, %arg1: i32) -> (i32, i32) {
    %c0_i32 = arith.constant 0 : i32
    %c0_i32_0 = arith.constant 0 : i32
    %c0_i32_1 = arith.constant 0 : i32
    return %c0_i32, %c0_i32_0 : i32, i32
  }
  func.func @transform_5(%arg0: i32, %arg1: i32) -> (i32, i32) {
    %c0_i32 = arith.constant 0 : i32
    %c0_i32_0 = arith.constant 0 : i32
    return %arg1, %c0_i32 : i32, i32
  }
  func.func @transform_6(%arg0: i32, %arg1: i32) -> (i32, i32, i32, i32) {
    %c0_i32 = arith.constant 0 : i32
    %c0_i32_0 = arith.constant 0 : i32
    %c0_i32_1 = arith.constant 0 : i32
    return %arg0, %c0_i32, %arg1, %c0_i32_0 : i32, i32, i32, i32
  }
  func.func @transform_7(%arg0: i32, %arg1: i32) -> (i32, i32, i32, i32) {
    %c0_i32 = arith.constant 0 : i32
    %c0_i32_0 = arith.constant 0 : i32
    %c0_i32_1 = arith.constant 0 : i32
    return %arg0, %c0_i32, %arg1, %c0_i32_0 : i32, i32, i32, i32
  }
  func.func @transform_8(%arg0: i32, %arg1: i32) -> (i32, i32, i32, i32) {
    %c0_i32 = arith.constant 0 : i32
    %c0_i32_0 = arith.constant 0 : i32
    %c0_i32_1 = arith.constant 0 : i32
    return %arg0, %c0_i32, %arg1, %c0_i32_0 : i32, i32, i32, i32
  }
}

</mosaic_0001>

<llo_original>
// kernel: tpu_custom_call.1
$region0: #{tpu_custom_call.1}
  #allocation0 [shape = 'u32[]', space=smem, size = 0x4, offset = 0x4, fixed_abs, tag = 'smem constant byte address 0x4 - core index']
  #allocation1 [shape = 'u32[72,128]{1,0:T(1,128)}', space=vmem, size = 0x9000, scoped, tag = 'internal scratch']
  %s0 = inlined_call_operand.hbm [shape: f32[2,16,32], index: 0, kind: input, shape index: {}]
  %s1 = inlined_call_operand.vmem [shape: f32[1,32], index: 1, kind: input, shape index: {}]
  %s2 = inlined_call_operand.vmem [shape: f32[1,32], index: 2, kind: input, shape index: {}]
  %s3 = inlined_call_operand.vmem [shape: bf16[32,32], index: 3, kind: input, shape index: {}]
  %s4 = inlined_call_operand.hbm [shape: bf16[32,64], index: 4, kind: input, shape index: {}]
  %s5 = inlined_call_operand.vmem [shape: f32[16,8], index: 5, kind: input, shape index: {}]
  %s6 = inlined_call_operand.vmem [shape: bf16[2,4,16,8], index: 6, kind: output, shape index: {0}]
  %s7 = inlined_call_operand.vmem [shape: bf16[2,4,16,8], index: 7, kind: output, shape index: {1}]
  %s8 = inlined_call_operand.vmem [shape: bf16[2,4,16,8], index: 8, kind: output, shape index: {2}]
  %9 = xla_tuple %s6, %s7, %s8
  %s10 = sld [smem:[#allocation0]]
  $region192: #{tpu_custom_call.1} parent=0
    _
  %s12 = ssub.s32 1, %s10
  %s13 = scalar_select 0, %s12, %s10
  $region1: #{tpu_custom_call.1} parent=0
    #allocation2 [shape = 'u8[8192]{0}', space=vmem, size = 0x2000, scoped, tag = 'input window, operand 0']
    #allocation3 [shape = 's32[2]{0}', space=sflag, size = 0x8, scoped, tag = 'scoped memory for tpu_custom_call.1']
    #allocation4 [shape = 'u8[8192]{0}', space=vmem, size = 0x2000, scoped, tag = 'input window, operand 4, single buffered']
    #allocation5 [shape = 's32[1]{0}', space=sflag, size = 0x4, scoped, tag = 'scoped memory for tpu_custom_call.1']
    #allocation6 [shape = 'u8[16384]{0}', space=vmem, size = 0x4000, scoped, tag = 'output window, operand 0']
    #allocation7 [shape = 'u8[16384]{0}', space=vmem, size = 0x4000, scoped, tag = 'output window, operand 1']
    #allocation8 [shape = 'u8[16384]{0}', space=vmem, size = 0x4000, scoped, tag = 'output window, operand 2']
    %14 = vsyncpa [#allocation3], 0
    %s15 = scalar_lea.sflag [#allocation3], 1
    %16 = vsyncpa %s15, 0
    %17 = vsyncpa [#allocation5], 0
    loop: start=0, step=1, limit=6
    $region2: #{tpu_custom_call.1} parent=1 // loop_pre_header
      _
    $region3: #{tpu_custom_call.1} parent=1 // loop_header
      %s19 = sphi 0, %s23
      %p20 = scmp.ge.s32.totalorder %s19, 6
      %s26 = sphi 0, %s38
      %s27 = sphi 0, %s34
      %s28 = sphi 0, %s26
      %s29 = sphi 0, %s27
      %s30 = sphi 0, %s28
      %s31 = sphi 0, %s29
      %s43 = sphi 0, %s45
      %s46 = sphi 0, %s43
      %s47 = sphi 0, %s46
      %s63 = sphi 0, %s47
      %s67 = sphi 0, %s67
      %s69 = sphi 0, %s67
      %s70 = sphi 0, %s69
      %s84 = sphi 0, %s70
      %s88 = sphi 0, %s88
      %s90 = sphi 0, %s88
      %s91 = sphi 0, %s90
      %s105 = sphi 0, %s91
      %s109 = sphi 0, %s109
      %s111 = sphi 0, %s109
      %s112 = sphi 0, %s111
      %s126 = sphi 0, %s112
      %s130 = sphi 0, %s130
      %s132 = sphi 0, %s130
      %s133 = sphi 0, %s132
      %s147 = sphi 0, %s133
      %s153 = sphi 0, %s155
      %s156 = sphi 0, %s153
      %s157 = sphi 0, %s156
      %s173 = sphi 0, %s157
      %s181 = sphi 0, %s183
      %s184 = sphi 0, %s181
      %s185 = sphi 0, %s184
      %s201 = sphi 0, %s185
      %s209 = sphi 0, %s211
      %s212 = sphi 0, %s209
      %s213 = sphi 0, %s212
      %s229 = sphi 0, %s213
      %s237 = sphi 0, %s239
      %s240 = sphi 0, %s237
      %s241 = sphi 0, %s240
      %s257 = sphi 0, %s241
    $region4: #{tpu_custom_call.1} parent=1 // loop_header_branch
      %22 = sbr.rel (%p20) target = $region8
    $region5: #{tpu_custom_call.1} parent=1 // loop_body
      %s24 = ssub.s32 %s19, 1
      %s25 = ssub.s32 %s19, 2
      %s32 = sadd.s32 1, %s27
      %p33 = scmp.ge.s32.totalorder %s32, 2
      %s34 = scalar_select %p33, 0, %s32
      %s35 = sadd.s32 1, %s26
      %s36 = scalar_select %p33, %s35, %s26
      %p37 = scmp.ge.s32.totalorder %s36, 2
      %s38 = scalar_select %p37, 0, %s36
      %s39 = ssub.s32 %s26, %s38
      %s40 = ssub.s32 %s27, %s34
      %s41 = sor.u32 %s39, %s40
      %p42 = scmp.eq.s32.totalorder %s41, 0
      %s44 = sadd.s32 %s43, 1
      %s45 = scalar_select %p42, %s43, %s44
      %p48 = pneg %p42
      %p49 = scmp.eq.s32.totalorder %s19, 3
      %p50 = por %p48, %p49
      %p51 = scmp.ne.s32.totalorder %s43, %s46
      %p52 = scmp.eq.s32.totalorder %s19, 0
      %p53 = por %p51, %p52
      %p54 = scmp.ne.s32.totalorder %s43, %s46
      %p55 = scmp.eq.s32.totalorder %s24, 3
      %p56 = por %p54, %p55
      %p57 = scmp.ne.s32.totalorder %s46, %s47
      %p58 = scmp.eq.s32.totalorder %s24, 0
      %p59 = por %p57, %p58
      %p60 = scmp.ne.s32.totalorder %s46, %s47
      %p61 = scmp.eq.s32.totalorder %s25, 3
      %p62 = por %p60, %p61
      %p64 = scmp.ne.s32.totalorder %s47, %s63
      %p65 = scmp.eq.s32.totalorder %s25, 0
      %p66 = por %p64, %p65
      %s68 = sadd.s32 %s67, 1
      %p71 = scmp.eq.s32.totalorder %s19, 3
      %p72 = scmp.ne.s32.totalorder %s67, %s69
      %p73 = scmp.eq.s32.totalorder %s19, 0
      %p74 = por %p72, %p73
      %p75 = scmp.ne.s32.totalorder %s67, %s69
      %p76 = scmp.eq.s32.totalorder %s24, 3
      %p77 = por %p75, %p76
      %p78 = scmp.ne.s32.totalorder %s69, %s70
      %p79 = scmp.eq.s32.totalorder %s24, 0
      %p80 = por %p78, %p79
      %p81 = scmp.ne.s32.totalorder %s69, %s70
      %p82 = scmp.eq.s32.totalorder %s25, 3
      %p83 = por %p81, %p82
      %p85 = scmp.ne.s32.totalorder %s70, %s84
      %p86 = scmp.eq.s32.totalorder %s25, 0
      %p87 = por %p85, %p86
      %s89 = sadd.s32 %s88, 1
      %p92 = scmp.eq.s32.totalorder %s19, 3
      %p93 = scmp.ne.s32.totalorder %s88, %s90
      %p94 = scmp.eq.s32.totalorder %s19, 0
      %p95 = por %p93, %p94
      %p96 = scmp.ne.s32.totalorder %s88, %s90
      %p97 = scmp.eq.s32.totalorder %s24, 3
      %p98 = por %p96, %p97
      %p99 = scmp.ne.s32.totalorder %s90, %s91
      %p100 = scmp.eq.s32.totalorder %s24, 0
      %p101 = por %p99, %p100
      %p102 = scmp.ne.s32.totalorder %s90, %s91
      %p103 = scmp.eq.s32.totalorder %s25, 3
      %p104 = por %p102, %p103
      %p106 = scmp.ne.s32.totalorder %s91, %s105
      %p107 = scmp.eq.s32.totalorder %s25, 0
      %p108 = por %p106, %p107
      %s110 = sadd.s32 %s109, 1
      %p113 = scmp.eq.s32.totalorder %s19, 3
      %p114 = scmp.ne.s32.totalorder %s109, %s111
      %p115 = scmp.eq.s32.totalorder %s19, 0
      %p116 = por %p114, %p115
      %p117 = scmp.ne.s32.totalorder %s109, %s111
      %p118 = scmp.eq.s32.totalorder %s24, 3
      %p119 = por %p117, %p118
      %p120 = scmp.ne.s32.totalorder %s111, %s112
      %p121 = scmp.eq.s32.totalorder %s24, 0
      %p122 = por %p120, %p121
      %p123 = scmp.ne.s32.totalorder %s111, %s112
      %p124 = scmp.eq.s32.totalorder %s25, 3
      %p125 = por %p123, %p124
      %p127 = scmp.ne.s32.totalorder %s112, %s126
      %p128 = scmp.eq.s32.totalorder %s25, 0
      %p129 = por %p127, %p128
      %s131 = sadd.s32 %s130, 1
      %p134 = scmp.eq.s32.totalorder %s19, 3
      %p135 = scmp.ne.s32.totalorder %s130, %s132
      %p136 = scmp.eq.s32.totalorder %s19, 0
      %p137 = por %p135, %p136
      %p138 = scmp.ne.s32.totalorder %s130, %s132
      %p139 = scmp.eq.s32.totalorder %s24, 3
      %p140 = por %p138, %p139
      %p141 = scmp.ne.s32.totalorder %s132, %s133
      %p142 = scmp.eq.s32.totalorder %s24, 0
      %p143 = por %p141, %p142
      %p144 = scmp.ne.s32.totalorder %s132, %s133
      %p145 = scmp.eq.s32.totalorder %s25, 3
      %p146 = por %p144, %p145
      %p148 = scmp.ne.s32.totalorder %s133, %s147
      %p149 = scmp.eq.s32.totalorder %s25, 0
      %p150 = por %p148, %p149
      %s151 = ssub.s32 %s27, %s34
      %p152 = scmp.eq.s32.totalorder %s151, 0
      %s154 = sadd.s32 %s153, 1
      %s155 = scalar_select %p152, %s153, %s154
      %p158 = pneg %p152
      %p159 = scmp.eq.s32.totalorder %s19, 3
      %p160 = por %p158, %p159
      %p161 = scmp.ne.s32.totalorder %s153, %s156
      %p162 = scmp.eq.s32.totalorder %s19, 0
      %p163 = por %p161, %p162
      %p164 = scmp.ne.s32.totalorder %s153, %s156
      %p165 = scmp.eq.s32.totalorder %s24, 3
      %p166 = por %p164, %p165
      %p167 = scmp.ne.s32.totalorder %s156, %s157
      %p168 = scmp.eq.s32.totalorder %s24, 0
      %p169 = por %p167, %p168
      %p170 = scmp.ne.s32.totalorder %s156, %s157
      %p171 = scmp.eq.s32.totalorder %s25, 3
      %p172 = por %p170, %p171
      %p174 = scmp.ne.s32.totalorder %s157, %s173
      %p175 = scmp.eq.s32.totalorder %s25, 0
      %p176 = por %p174, %p175
      %s177 = ssub.s32 %s26, %s38
      %s178 = ssub.s32 %s27, %s34
      %s179 = sor.u32 %s177, %s178
      %p180 = scmp.eq.s32.totalorder %s179, 0
      %s182 = sadd.s32 %s181, 1
      %s183 = scalar_select %p180, %s181, %s182
      %p186 = pneg %p180
      %p187 = scmp.eq.s32.totalorder %s19, 3
      %p188 = por %p186, %p187
      %p189 = scmp.ne.s32.totalorder %s181, %s184
      %p190 = scmp.eq.s32.totalorder %s19, 0
      %p191 = por %p189, %p190
      %p192 = scmp.ne.s32.totalorder %s181, %s184
      %p193 = scmp.eq.s32.totalorder %s24, 3
      %p194 = por %p192, %p193
      %p195 = scmp.ne.s32.totalorder %s184, %s185
      %p196 = scmp.eq.s32.totalorder %s24, 0
      %p197 = por %p195, %p196
      %p198 = scmp.ne.s32.totalorder %s184, %s185
      %p199 = scmp.eq.s32.totalorder %s25, 3
      %p200 = por %p198, %p199
      %p202 = scmp.ne.s32.totalorder %s185, %s201
      %p203 = scmp.eq.s32.totalorder %s25, 0
      %p204 = por %p202, %p203
      %s205 = ssub.s32 %s26, %s38
      %s206 = ssub.s32 %s27, %s34
      %s207 = sor.u32 %s205, %s206
      %p208 = scmp.eq.s32.totalorder %s207, 0
      %s210 = sadd.s32 %s209, 1
      %s211 = scalar_select %p208, %s209, %s210
      %p214 = pneg %p208
      %p215 = scmp.eq.s32.totalorder %s19, 3
      %p216 = por %p214, %p215
      %p217 = scmp.ne.s32.totalorder %s209, %s212
      %p218 = scmp.eq.s32.totalorder %s19, 0
      %p219 = por %p217, %p218
      %p220 = scmp.ne.s32.totalorder %s209, %s212
      %p221 = scmp.eq.s32.totalorder %s24, 3
      %p222 = por %p220, %p221
      %p223 = scmp.ne.s32.totalorder %s212, %s213
      %p224 = scmp.eq.s32.totalorder %s24, 0
      %p225 = por %p223, %p224
      %p226 = scmp.ne.s32.totalorder %s212, %s213
      %p227 = scmp.eq.s32.totalorder %s25, 3
      %p228 = por %p226, %p227
      %p230 = scmp.ne.s32.totalorder %s213, %s229
      %p231 = scmp.eq.s32.totalorder %s25, 0
      %p232 = por %p230, %p231
      %s233 = ssub.s32 %s26, %s38
      %s234 = ssub.s32 %s27, %s34
      %s235 = sor.u32 %s233, %s234
      %p236 = scmp.eq.s32.totalorder %s235, 0
      %s238 = sadd.s32 %s237, 1
      %s239 = scalar_select %p236, %s237, %s238
      %p242 = pneg %p236
      %p243 = scmp.eq.s32.totalorder %s19, 3
      %p244 = por %p242, %p243
      %p245 = scmp.ne.s32.totalorder %s237, %s240
      %p246 = scmp.eq.s32.totalorder %s19, 0
      %p247 = por %p245, %p246
      %p248 = scmp.ne.s32.totalorder %s237, %s240
      %p249 = scmp.eq.s32.totalorder %s24, 3
      %p250 = por %p248, %p249
      %p251 = scmp.ne.s32.totalorder %s240, %s241
      %p252 = scmp.eq.s32.totalorder %s24, 0
      %p253 = por %p251, %p252
      %p254 = scmp.ne.s32.totalorder %s240, %s241
      %p255 = scmp.eq.s32.totalorder %s25, 3
      %p256 = por %p254, %p255
      %p258 = scmp.ne.s32.totalorder %s241, %s257
      %p259 = scmp.eq.s32.totalorder %s25, 0
      %p260 = por %p258, %p259
      %p261 = scmp.le.s32.totalorder 1, %s19
      %p262 = scmp.lt.s32.totalorder %s19, 5
      %p263 = pnand %p261, %p262
      %p264 = pneg %p263
      // Predicated region
      $region9: #{tpu_custom_call.1} parent=5 // pred_check
        _
      $region10: #{tpu_custom_call.1} parent=5 // pred_check_branch
        %266 = sbr.rel (%p263) target = $region12
      $region11: #{tpu_custom_call.1} parent=5 // pred_region
        %s267 = ssub.s32 %s19, 1
        // Predicated region
        $region13: #{tpu_custom_call.1} parent=11 // pred_check
          %p268 = pneg %p80
        $region14: #{tpu_custom_call.1} parent=11 // pred_check_branch
          %270 = sbr.rel (%p268) target = $region16
        $region15: #{tpu_custom_call.1} parent=11 // pred_region
          _
        $region16: #{tpu_custom_call.1} parent=11 // pred_fallthru
          _
        // Predicated region
        $region17: #{tpu_custom_call.1} parent=11 // pred_check
          %p271 = pneg %p101
        $region18: #{tpu_custom_call.1} parent=11 // pred_check_branch
          %273 = sbr.rel (%p271) target = $region20
        $region19: #{tpu_custom_call.1} parent=11 // pred_region
          _
        $region20: #{tpu_custom_call.1} parent=11 // pred_fallthru
          _
        // Predicated region
        $region21: #{tpu_custom_call.1} parent=11 // pred_check
          %p274 = pneg %p122
        $region22: #{tpu_custom_call.1} parent=11 // pred_check_branch
          %276 = sbr.rel (%p274) target = $region24
        $region23: #{tpu_custom_call.1} parent=11 // pred_region
          _
        $region24: #{tpu_custom_call.1} parent=11 // pred_fallthru
          _
        // Predicated region
        $region25: #{tpu_custom_call.1} parent=11 // pred_check
          %p277 = pneg %p143
        $region26: #{tpu_custom_call.1} parent=11 // pred_check_branch
          %279 = sbr.rel (%p277) target = $region28
        $region27: #{tpu_custom_call.1} parent=11 // pred_region
          %281 = vsyncadd [#allocation5], 0
          %s282 = sshll.u32 %s4, 4
          %s283 = int_to_ptr.hbm [resolvable:$true] %s282
          %s284 = sshll.u32 [#allocation4], 4
          %s285 = int_to_ptr.vmem [resolvable:$true] %s284
          %290 = dma.hbm_to_vmem [thread:$0]  %s283, 256, %s285, [#allocation5], 64, 64, 4
        $region28: #{tpu_custom_call.1} parent=11 // pred_fallthru
          _
      $region12: #{tpu_custom_call.1} parent=5 // pred_fallthru
        _
      %p291 = scmp.lt.s32.totalorder %s19, 4
      // Predicated region
      $region29: #{tpu_custom_call.1} parent=5 // pred_check
        %p292 = pneg %p291
      $region30: #{tpu_custom_call.1} parent=5 // pred_check_branch
        %294 = sbr.rel (%p292) target = $region32
      $region31: #{tpu_custom_call.1} parent=5 // pred_region
        // Predicated region
        $region33: #{tpu_custom_call.1} parent=31 // pred_check
          %p295 = pneg %p53
        $region34: #{tpu_custom_call.1} parent=31 // pred_check_branch
          %297 = sbr.rel (%p295) target = $region36
        $region35: #{tpu_custom_call.1} parent=31 // pred_region
          %s298 = sand.u32 %s43, 1
          %s299 = scalar_lea.sflag [#allocation3], %s298
          %s300 = sand.u32 %s43, 1
          %s301 = smul.addr %s300, 8
          %s302 = scalar_lea.vmem [#allocation2], %s301
          %304 = vsyncadd %s299, 0
          %s305 = smul.addr %s26, 2
          %s306 = sadd.s32 %s27, %s305
          %s307 = smul.addr %s306, 8
          %s308 = scalar_lea.hbm %s0, %s307
          %s310 = sshll.u32 %s308, 4
          %s311 = int_to_ptr.hbm [resolvable:$true] %s310
          %s312 = sshll.u32 %s302, 4
          %s313 = int_to_ptr.vmem [resolvable:$true] %s312
          %315 = dma.hbm_to_vmem [thread:$0]  %s311, 128, %s313, %s299
        $region36: #{tpu_custom_call.1} parent=31 // pred_fallthru
          _
        // Predicated region
        $region37: #{tpu_custom_call.1} parent=31 // pred_check
          %p316 = pneg %p163
        $region38: #{tpu_custom_call.1} parent=31 // pred_check_branch
          %318 = sbr.rel (%p316) target = $region40
        $region39: #{tpu_custom_call.1} parent=31 // pred_region
          %p319 = scmp.lt.s32.totalorder %s27, 1
          %s320 = scalar_select %p319, %s27, 1
          %s321 = smul.addr %s320, 8
          %s322 = scalar_lea.vmem %s5, %s321
        $region40: #{tpu_custom_call.1} parent=31 // pred_fallthru
          _
      $region32: #{tpu_custom_call.1} parent=5 // pred_fallthru
        _
      %p323 = scmp.le.s32.totalorder 1, %s19
      %p324 = scmp.lt.s32.totalorder %s19, 5
      %p325 = pnand %p323, %p324
      %p326 = pneg %p325
      // Predicated region
      $region41: #{tpu_custom_call.1} parent=5 // pred_check
        _
      $region42: #{tpu_custom_call.1} parent=5 // pred_check_branch
        %328 = sbr.rel (%p325) target = $region44
      $region43: #{tpu_custom_call.1} parent=5 // pred_region
        %s329 = ssub.s32 %s19, 1
        %s330 = sand.u32 %s46, 1
        %s331 = scalar_lea.sflag [#allocation3], %s330
        %s332 = sand.u32 %s46, 1
        %s333 = smul.addr %s332, 8
        %s334 = scalar_lea.vmem [#allocation2], %s333
        // Predicated region
        $region45: #{tpu_custom_call.1} parent=43 // pred_check
          %p335 = pneg %p59
        $region46: #{tpu_custom_call.1} parent=43 // pred_check_branch
          %337 = sbr.rel (%p335) target = $region48
        $region47: #{tpu_custom_call.1} parent=43 // pred_region
          %339 = dma.done %s331, 128
        $region48: #{tpu_custom_call.1} parent=43 // pred_fallthru
          _
        // Predicated region
        $region49: #{tpu_custom_call.1} parent=43 // pred_check
          %p340 = pneg %p143
        $region50: #{tpu_custom_call.1} parent=43 // pred_check_branch
          %342 = sbr.rel (%p340) target = $region52
        $region51: #{tpu_custom_call.1} parent=43 // pred_region
          %344 = dma.done [#allocation5], 256
        $region52: #{tpu_custom_call.1} parent=43 // pred_fallthru
          _
        %s345 = sand.u32 %s46, 1
        %s346 = scalar_lea.sflag [#allocation3], %s345
        %s347 = sand.u32 %s46, 1
        %s348 = smul.addr %s347, 8
        %s349 = scalar_lea.vmem [#allocation2], %s348
        %p350 = pneg %p59
        %p351 = pneg %p56
        %p352 = pneg %p80
        %p353 = pneg %p77
        %p354 = pneg %p101
        %p355 = pneg %p98
        %p356 = pneg %p122
        %p357 = pneg %p119
        %p358 = pneg %p143
        %p359 = pneg %p140
        %p360 = scmp.lt.s32.totalorder %s29, 1
        %s361 = scalar_select %p360, %s29, 1
        %s362 = smul.addr %s361, 8
        %s363 = scalar_lea.vmem %s5, %s362
        %p364 = pneg %p169
        %p365 = pneg %p166
        %p366 = pneg %p197
        %p367 = pneg %p194
        %s368 = sand.u32 %s184, 1
        %s369 = sand.u32 %s184, 1
        %s370 = smul.addr %s369, 16
        %s371 = scalar_lea.vmem [#allocation6], %s370
        %p372 = pneg %p225
        %p373 = pneg %p222
        %s374 = sand.u32 %s212, 1
        %s375 = sand.u32 %s212, 1
        %s376 = smul.addr %s375, 16
        %s377 = scalar_lea.vmem [#allocation7], %s376
        %p378 = pneg %p253
        %p379 = pneg %p250
        %s380 = sand.u32 %s240, 1
        %s381 = sand.u32 %s240, 1
        %s382 = smul.addr %s381, 16
        %s383 = scalar_lea.vmem [#allocation8], %s382
        %p384 = scmp.lt.s32.totalorder %s29, 1
        %s385 = scalar_select %p384, %s29, 1
        %s386 = smul.addr %s385, 8
        %s387 = scalar_lea.vmem %s5, %s386
        %v389 = vld [vmem:[%s334] sm:$0xff]
        %v390 = vld [vmem:[%s1] sm:$0x1]
        %v391 = vld [vmem:[%s2] sm:$0x1]
        %vm392 = vcmask 261120
        %v393 = vsel %vm392, %v389, 0.0
        %394 = vadd.xlane.f32.xlu0 %v393
        %v395 = vpop.xlane.xlu0 %394
        %v396 = vrcp.pop 32.0
        %v397 = vmul.f32 32.0, %v396
        %v398 = vsub.f32 1.0, %v397
        %v399 = vmul.f32 %v396, %v398
        %v400 = vadd.f32 %v396, %v399
        %vm401 = vweird.f32 %v396
        %v402 = vsel %vm401, %v396, %v400
        %v403 = vmul.f32 %v395, %v402
        %v404 = vsub.f32 %v389, %v403
        %v405 = vmul.f32 %v404, %v404
        %v406 = vsel %vm392, %v405, 0.0
        %407 = vadd.xlane.f32.xlu0 %v406
        %v408 = vpop.xlane.xlu0 %407
        %v409 = vmul.f32 %v408, %v402
        %v410 = vadd.f32 %v409, 1e-05
        %v411 = vrsqrt.pop %v410
        %v412 = vmul.f32 %v411, %v410
        %v413 = vmul.f32 %v412, %v411
        %v414 = vmul.f32 0.5, %v413
        %v415 = vsub.f32 1.5, %v414
        %v416 = vmul.f32 %v411, %v415
        %vm417 = vweird.f32 %v410
        %vm418 = vweird.f32 %v411
        %vm419 = vmor %vm417, %vm418
        %v420 = vsel %vm419, %v411, %v416
        %v421 = vmul.f32 %v404, %v420
        %v423 = vperm.slane %v390, 0
        %v425 = vmul.f32 %v421, %v423
        %v427 = vperm.slane %v391, 0
        %v429 = vadd.f32 %v425, %v427
        %v430 = vpack.c.bf16 %v429, %v429
        %v431 = vld [vmem:[%s3] sm:$0xf]
        %v432 = vld [vmem:[%s3 + $0x4] sm:$0xf]
        %v433 = vld [vmem:[%s3 + $0x8] sm:$0xf]
        %v434 = vld [vmem:[%s3 + $0xc] sm:$0xf]
        %v439 = vunpack.c.l.b16 %v431
        %v440 = vunpack.c.l.b16 %v432
        %v441 = vunpack.c.l.b16 %v433
        %v442 = vunpack.c.l.b16 %v434
        %v443 = vpack.c.b16 %v440, %v439
        %v444 = vpack.c.b16 %v442, %v441
        %v448 = vsel %vm392, %v430, 0
        %450 = vmatpush.bf16.msra.mxu0 0
        %451 = vmatpush.bf16.msra.mxu0 0
        %452 = vmatpush.bf16.msra.mxu0 0
        %453 = vmatpush.bf16.msra.mxu0 0
        %454 = vmatpush.bf16.msra.mxu0 0
        %455 = vmatpush.bf16.msra.mxu0 0
        %456 = vmatpush.bf16.msra.mxu0 %v444
        %457 = vmatpush.bf16.msra.mxu0 %v443
        %458 = vmatmul.bf16.gmra.mxu0 %v448
        %v459 = vpop.f32.mrf.mxu0
        %v460 = vadd.f32 0.0, %v459
        %v461 = vpop.f32.mrf.mxu0
        %462 = vdwg.mxu0
        %v463 = vld [vmem:[#allocation4] sm:$0xf]
        %v464 = vld [vmem:[#allocation4 + $0x4] sm:$0xf]
        %v465 = vld [vmem:[#allocation4 + $0x8] sm:$0xf]
        %v466 = vld [vmem:[#allocation4 + $0xc] sm:$0xf]
        %v471 = vunpack.c.l.b16 %v463
        %v472 = vunpack.c.l.b16 %v464
        %v473 = vunpack.c.l.b16 %v465
        %v474 = vunpack.c.l.b16 %v466
        %v475 = vpack.c.b16 %v472, %v471
        %v476 = vpack.c.b16 %v474, %v473
        %479 = vmatpush.bf16.msra.mxu0 0
        %480 = vmatpush.bf16.msra.mxu0 0
        %481 = vmatpush.bf16.msra.mxu0 0
        %482 = vmatpush.bf16.msra.mxu0 0
        %483 = vmatpush.bf16.msra.mxu0 0
        %484 = vmatpush.bf16.msra.mxu0 0
        %485 = vmatpush.bf16.msra.mxu0 %v476
        %486 = vmatpush.bf16.msra.mxu0 %v475
        %487 = vmatmul.bf16.gmra.mxu0 %v448
        %v488 = vpop.f32.mrf.mxu0
        %v489 = vadd.f32 0.0, %v488
        %v490 = vpop.f32.mrf.mxu0
        %491 = vdwg.mxu0
        %v492 = vld [vmem:[%s387] sm:$0xff]
        %v493 = vmul.f32 %v460, %v492
        %v494 = vmul.f32 %v489, %v492
        %v495 = vpack.c.bf16 %v493, %v493
        %vm496 = vcmask 60416
        %497 = vst.msk [vmem:[%s371] sm:$0xf] %vm496, %v495
        %v498 = vpack.c.bf16 %v494, %v494
        %499 = vst.msk [vmem:[%s377] sm:$0xf] %vm496, %v498
        %v500 = vpack.c.bf16 %v489, %v489
        %502 = vrot.lane.b32.xlu0 %v500, 96
        %v503 = vpop.permute.xlu0 %502
        %505 = vst.msk [vmem:[%s383] sm:$0xf] %vm496, %v503
        %507 = vrot.lane.b32.xlu0 %v492, 8
        %v508 = vpop.permute.xlu0 %507
        %v510 = vmul.f32 %v460, %v508
        %v511 = vmul.f32 %v489, %v508
        %v512 = vpack.c.bf16 %v510, %v510
        %514 = vrot.lane.b32.xlu0 %v512, 120
        %v515 = vpop.permute.xlu0 %514
        %s517 = scalar_lea.vmem %s371, 4 [#allocation6]
        %518 = vst.msk [vmem:[%s517] sm:$0xf] %vm496, %v515
        %v519 = vpack.c.bf16 %v511, %v511
        %521 = vrot.lane.b32.xlu0 %v519, 120
        %v522 = vpop.permute.xlu0 %521
        %s524 = scalar_lea.vmem %s377, 4 [#allocation7]
        %525 = vst.msk [vmem:[%s524] sm:$0xf] %vm496, %v522
        %526 = vrot.lane.b32.xlu0 %v500, 88
        %v527 = vpop.permute.xlu0 %526
        %s529 = scalar_lea.vmem %s383, 4 [#allocation8]
        %530 = vst.msk [vmem:[%s529] sm:$0xf] %vm496, %v527
        %531 = vrot.lane.b32.xlu0 %v492, 16
        %v532 = vpop.permute.xlu0 %531
        %v534 = vmul.f32 %v460, %v532
        %v535 = vmul.f32 %v489, %v532
        %v536 = vpack.c.bf16 %v534, %v534
        %538 = vrot.lane.b32.xlu0 %v536, 112
        %v539 = vpop.permute.xlu0 %538
        %s541 = scalar_lea.vmem %s371, 8 [#allocation6]
        %542 = vst.msk [vmem:[%s541] sm:$0xf] %vm496, %v539
        %v543 = vpack.c.bf16 %v535, %v535
        %545 = vrot.lane.b32.xlu0 %v543, 112
        %v546 = vpop.permute.xlu0 %545
        %s548 = scalar_lea.vmem %s377, 8 [#allocation7]
        %549 = vst.msk [vmem:[%s548] sm:$0xf] %vm496, %v546
        %550 = vrot.lane.b32.xlu0 %v500, 80
        %v551 = vpop.permute.xlu0 %550
        %s553 = scalar_lea.vmem %s383, 8 [#allocation8]
        %554 = vst.msk [vmem:[%s553] sm:$0xf] %vm496, %v551
        %555 = vrot.lane.b32.xlu0 %v492, 24
        %v556 = vpop.permute.xlu0 %555
        %v558 = vmul.f32 %v460, %v556
        %v559 = vmul.f32 %v489, %v556
        %v560 = vpack.c.bf16 %v558, %v558
        %562 = vrot.lane.b32.xlu0 %v560, 104
        %v563 = vpop.permute.xlu0 %562
        %s565 = scalar_lea.vmem %s371, 12 [#allocation6]
        %566 = vst.msk [vmem:[%s565] sm:$0xf] %vm496, %v563
        %v567 = vpack.c.bf16 %v559, %v559
        %569 = vrot.lane.b32.xlu0 %v567, 104
        %v570 = vpop.permute.xlu0 %569
        %s572 = scalar_lea.vmem %s377, 12 [#allocation7]
        %573 = vst.msk [vmem:[%s572] sm:$0xf] %vm496, %v570
        %574 = vrot.lane.b32.xlu0 %v500, 72
        %v575 = vpop.permute.xlu0 %574
        %s577 = scalar_lea.vmem %s383, 12 [#allocation8]
        %578 = vst.msk [vmem:[%s577] sm:$0xf] %vm496, %v575
        %s579 = sand.u32 %s184, 1
        %s580 = sand.u32 %s184, 1
        %s581 = smul.addr %s580, 16
        %s582 = scalar_lea.vmem [#allocation6], %s581
        %s583 = sand.u32 %s212, 1
        %s584 = sand.u32 %s212, 1
        %s585 = smul.addr %s584, 16
        %s586 = scalar_lea.vmem [#allocation7], %s585
        %s587 = sand.u32 %s240, 1
        %s588 = sand.u32 %s240, 1
        %s589 = smul.addr %s588, 16
        %s590 = scalar_lea.vmem [#allocation8], %s589
        // Predicated region
        $region53: #{tpu_custom_call.1} parent=43 // pred_check
          %p591 = pneg %p194
        $region54: #{tpu_custom_call.1} parent=43 // pred_check_branch
          %593 = sbr.rel (%p591) target = $region56
        $region55: #{tpu_custom_call.1} parent=43 // pred_region
          %s594 = smul.addr %s28, 8
          %s595 = sadd.s32 %s29, %s594
          %s596 = smul.addr %s595, 4
          %s597 = scalar_lea.vmem %s6, %s596
          // Predicated region
          $region57: #{tpu_custom_call.1} parent=55 // pred_check
            _
          $region58: #{tpu_custom_call.1} parent=55 // pred_check_branch
            %599 = sbr.rel (0) target = $region60
          $region59: #{tpu_custom_call.1} parent=55 // pred_region
            // Predicated region
            $region61: #{tpu_custom_call.1} parent=59 // pred_check
              _
            $region62: #{tpu_custom_call.1} parent=59 // pred_check_branch
              %601 = sbr.rel target = $region64
            $region63: #{tpu_custom_call.1} parent=59 // pred_region
              // Predicated region
              $region76: #{tpu_custom_call.1} parent=63 // pred_check
                _
              $region77: #{tpu_custom_call.1} parent=63 // pred_check_branch
                %623 = sbr.rel (0) target = $region79
              $region78: #{tpu_custom_call.1} parent=63 // pred_region
                loop: start=0, step=1, limit=1
                $region80: #{tpu_custom_call.1} parent=78 // loop_pre_header
                  _
                $region81: #{tpu_custom_call.1} parent=78 // loop_header
                  %s625 = sphi 0, %s629
                  %p626 = scmp.ge.s32.totalorder %s625, 1
                  %s630 = sphi %s582, %s582
                  %s631 = sphi %s597, %s597
                $region82: #{tpu_custom_call.1} parent=78 // loop_header_branch
                  %628 = sbr.rel (%p626) target = $region86
                $region83: #{tpu_custom_call.1} parent=78 // loop_body
                  _
                $region84: #{tpu_custom_call.1} parent=78 // loop_footer
                  %s629 = sadd.s32 1, %s625
                $region85: #{tpu_custom_call.1} parent=78 // loop_footer_branch
                  %624 = sbr.rel target = $region81
                $region86: #{tpu_custom_call.1} parent=78 // loop_exit
                  _
                %s633 = ssub.s32 16, 1
                loop: start=0, step=1, limit=1
                $region87: #{tpu_custom_call.1} parent=78 // loop_pre_header
                  _
                $region88: #{tpu_custom_call.1} parent=78 // loop_header
                  %s635 = sphi 0, %s639
                  %p636 = scmp.ge.s32.totalorder %s635, 1
                  %s640 = sphi %s582, %s582
                  %s641 = sphi %s597, %s597
                $region89: #{tpu_custom_call.1} parent=78 // loop_header_branch
                  %638 = sbr.rel (%p636) target = $region93
                $region90: #{tpu_custom_call.1} parent=78 // loop_body
                  %v642 = vld [vmem:[%s640] sm:%s633]
                  %643 = vst [vmem:[%s641] sm:%s633] %v642
                  %v644 = vld [vmem:[%s640 + $0x4] sm:%s633]
                  %645 = vst [vmem:[%s641 + $0x8] sm:%s633] %v644
                  %v646 = vld [vmem:[%s640 + $0x8] sm:%s633]
                  %647 = vst [vmem:[%s641 + $0x10] sm:%s633] %v646
                  %v648 = vld [vmem:[%s640 + $0xc] sm:%s633]
                  %649 = vst [vmem:[%s641 + $0x18] sm:%s633] %v648
                $region91: #{tpu_custom_call.1} parent=78 // loop_footer
                  %s639 = sadd.s32 1, %s635
                $region92: #{tpu_custom_call.1} parent=78 // loop_footer_branch
                  %634 = sbr.rel target = $region88
                $region93: #{tpu_custom_call.1} parent=78 // loop_exit
                  _
              $region79: #{tpu_custom_call.1} parent=63 // pred_fallthru
                _
            $region64: #{tpu_custom_call.1} parent=59 // pred_fallthru
              _
            // Predicated region
            $region65: #{tpu_custom_call.1} parent=59 // pred_check
              _
            $region66: #{tpu_custom_call.1} parent=59 // pred_check_branch
              %603 = sbr.rel (0) target = $region68
            $region67: #{tpu_custom_call.1} parent=59 // pred_region
              %s605 = ssub.s32 16, 1
              loop: start=0, step=1, limit=1
              $region69: #{tpu_custom_call.1} parent=67 // loop_pre_header
                _
              $region70: #{tpu_custom_call.1} parent=67 // loop_header
                %s607 = sphi 0, %s611
                %p608 = scmp.ge.s32.totalorder %s607, 1
                %s612 = sphi %s582, %s582
                %s613 = sphi %s597, %s597
              $region71: #{tpu_custom_call.1} parent=67 // loop_header_branch
                %610 = sbr.rel (%p608) target = $region75
              $region72: #{tpu_custom_call.1} parent=67 // loop_body
                %v614 = vld [vmem:[%s612] sm:%s605]
                %615 = vst [vmem:[%s613] sm:%s605] %v614
                %v616 = vld [vmem:[%s612 + $0x4] sm:%s605]
                %617 = vst [vmem:[%s613 + $0x8] sm:%s605] %v616
                %v618 = vld [vmem:[%s612 + $0x8] sm:%s605]
                %619 = vst [vmem:[%s613 + $0x10] sm:%s605] %v618
                %v620 = vld [vmem:[%s612 + $0xc] sm:%s605]
                %621 = vst [vmem:[%s613 + $0x18] sm:%s605] %v620
              $region73: #{tpu_custom_call.1} parent=67 // loop_footer
                %s611 = sadd.s32 1, %s607
              $region74: #{tpu_custom_call.1} parent=67 // loop_footer_branch
                %606 = sbr.rel target = $region70
              $region75: #{tpu_custom_call.1} parent=67 // loop_exit
                _
            $region68: #{tpu_custom_call.1} parent=59 // pred_fallthru
              _
          $region60: #{tpu_custom_call.1} parent=55 // pred_fallthru
            _
          %650 = vnop
        $region56: #{tpu_custom_call.1} parent=43 // pred_fallthru
          _
        // Predicated region
        $region94: #{tpu_custom_call.1} parent=43 // pred_check
          %p651 = pneg %p222
        $region95: #{tpu_custom_call.1} parent=43 // pred_check_branch
          %653 = sbr.rel (%p651) target = $region97
        $region96: #{tpu_custom_call.1} parent=43 // pred_region
          %s654 = smul.addr %s28, 8
          %s655 = sadd.s32 %s29, %s654
          %s656 = smul.addr %s655, 4
          %s657 = scalar_lea.vmem %s7, %s656
          // Predicated region
          $region98: #{tpu_custom_call.1} parent=96 // pred_check
            _
          $region99: #{tpu_custom_call.1} parent=96 // pred_check_branch
            %659 = sbr.rel (0) target = $region101
          $region100: #{tpu_custom_call.1} parent=96 // pred_region
            // Predicated region
            $region102: #{tpu_custom_call.1} parent=100 // pred_check
              _
            $region103: #{tpu_custom_call.1} parent=100 // pred_check_branch
              %661 = sbr.rel target = $region105
            $region104: #{tpu_custom_call.1} parent=100 // pred_region
              // Predicated region
              $region117: #{tpu_custom_call.1} parent=104 // pred_check
                _
              $region118: #{tpu_custom_call.1} parent=104 // pred_check_branch
                %683 = sbr.rel (0) target = $region120
              $region119: #{tpu_custom_call.1} parent=104 // pred_region
                loop: start=0, step=1, limit=1
                $region121: #{tpu_custom_call.1} parent=119 // loop_pre_header
                  _
                $region122: #{tpu_custom_call.1} parent=119 // loop_header
                  %s685 = sphi 0, %s689
                  %p686 = scmp.ge.s32.totalorder %s685, 1
                  %s690 = sphi %s586, %s586
                  %s691 = sphi %s657, %s657
                $region123: #{tpu_custom_call.1} parent=119 // loop_header_branch
                  %688 = sbr.rel (%p686) target = $region127
                $region124: #{tpu_custom_call.1} parent=119 // loop_body
                  _
                $region125: #{tpu_custom_call.1} parent=119 // loop_footer
                  %s689 = sadd.s32 1, %s685
                $region126: #{tpu_custom_call.1} parent=119 // loop_footer_branch
                  %684 = sbr.rel target = $region122
                $region127: #{tpu_custom_call.1} parent=119 // loop_exit
                  _
                %s693 = ssub.s32 16, 1
                loop: start=0, step=1, limit=1
                $region128: #{tpu_custom_call.1} parent=119 // loop_pre_header
                  _
                $region129: #{tpu_custom_call.1} parent=119 // loop_header
                  %s695 = sphi 0, %s699
                  %p696 = scmp.ge.s32.totalorder %s695, 1
                  %s700 = sphi %s586, %s586
                  %s701 = sphi %s657, %s657
                $region130: #{tpu_custom_call.1} parent=119 // loop_header_branch
                  %698 = sbr.rel (%p696) target = $region134
                $region131: #{tpu_custom_call.1} parent=119 // loop_body
                  %v702 = vld [vmem:[%s700] sm:%s693]
                  %703 = vst [vmem:[%s701] sm:%s693] %v702
                  %v704 = vld [vmem:[%s700 + $0x4] sm:%s693]
                  %705 = vst [vmem:[%s701 + $0x8] sm:%s693] %v704
                  %v706 = vld [vmem:[%s700 + $0x8] sm:%s693]
                  %707 = vst [vmem:[%s701 + $0x10] sm:%s693] %v706
                  %v708 = vld [vmem:[%s700 + $0xc] sm:%s693]
                  %709 = vst [vmem:[%s701 + $0x18] sm:%s693] %v708
                $region132: #{tpu_custom_call.1} parent=119 // loop_footer
                  %s699 = sadd.s32 1, %s695
                $region133: #{tpu_custom_call.1} parent=119 // loop_footer_branch
                  %694 = sbr.rel target = $region129
                $region134: #{tpu_custom_call.1} parent=119 // loop_exit
                  _
              $region120: #{tpu_custom_call.1} parent=104 // pred_fallthru
                _
            $region105: #{tpu_custom_call.1} parent=100 // pred_fallthru
              _
            // Predicated region
            $region106: #{tpu_custom_call.1} parent=100 // pred_check
              _
            $region107: #{tpu_custom_call.1} parent=100 // pred_check_branch
              %663 = sbr.rel (0) target = $region109
            $region108: #{tpu_custom_call.1} parent=100 // pred_region
              %s665 = ssub.s32 16, 1
              loop: start=0, step=1, limit=1
              $region110: #{tpu_custom_call.1} parent=108 // loop_pre_header
                _
              $region111: #{tpu_custom_call.1} parent=108 // loop_header
                %s667 = sphi 0, %s671
                %p668 = scmp.ge.s32.totalorder %s667, 1
                %s672 = sphi %s586, %s586
                %s673 = sphi %s657, %s657
              $region112: #{tpu_custom_call.1} parent=108 // loop_header_branch
                %670 = sbr.rel (%p668) target = $region116
              $region113: #{tpu_custom_call.1} parent=108 // loop_body
                %v674 = vld [vmem:[%s672] sm:%s665]
                %675 = vst [vmem:[%s673] sm:%s665] %v674
                %v676 = vld [vmem:[%s672 + $0x4] sm:%s665]
                %677 = vst [vmem:[%s673 + $0x8] sm:%s665] %v676
                %v678 = vld [vmem:[%s672 + $0x8] sm:%s665]
                %679 = vst [vmem:[%s673 + $0x10] sm:%s665] %v678
                %v680 = vld [vmem:[%s672 + $0xc] sm:%s665]
                %681 = vst [vmem:[%s673 + $0x18] sm:%s665] %v680
              $region114: #{tpu_custom_call.1} parent=108 // loop_footer
                %s671 = sadd.s32 1, %s667
              $region115: #{tpu_custom_call.1} parent=108 // loop_footer_branch
                %666 = sbr.rel target = $region111
              $region116: #{tpu_custom_call.1} parent=108 // loop_exit
                _
            $region109: #{tpu_custom_call.1} parent=100 // pred_fallthru
              _
          $region101: #{tpu_custom_call.1} parent=96 // pred_fallthru
            _
          %710 = vnop
        $region97: #{tpu_custom_call.1} parent=43 // pred_fallthru
          _
        // Predicated region
        $region135: #{tpu_custom_call.1} parent=43 // pred_check
          %p711 = pneg %p250
        $region136: #{tpu_custom_call.1} parent=43 // pred_check_branch
          %713 = sbr.rel (%p711) target = $region138
        $region137: #{tpu_custom_call.1} parent=43 // pred_region
          %s714 = smul.addr %s28, 8
          %s715 = sadd.s32 %s29, %s714
          %s716 = smul.addr %s715, 4
          %s717 = scalar_lea.vmem %s8, %s716
          // Predicated region
          $region139: #{tpu_custom_call.1} parent=137 // pred_check
            _
          $region140: #{tpu_custom_call.1} parent=137 // pred_check_branch
            %719 = sbr.rel (0) target = $region142
          $region141: #{tpu_custom_call.1} parent=137 // pred_region
            // Predicated region
            $region143: #{tpu_custom_call.1} parent=141 // pred_check
              _
            $region144: #{tpu_custom_call.1} parent=141 // pred_check_branch
              %721 = sbr.rel target = $region146
            $region145: #{tpu_custom_call.1} parent=141 // pred_region
              // Predicated region
              $region158: #{tpu_custom_call.1} parent=145 // pred_check
                _
              $region159: #{tpu_custom_call.1} parent=145 // pred_check_branch
                %743 = sbr.rel (0) target = $region161
              $region160: #{tpu_custom_call.1} parent=145 // pred_region
                loop: start=0, step=1, limit=1
                $region162: #{tpu_custom_call.1} parent=160 // loop_pre_header
                  _
                $region163: #{tpu_custom_call.1} parent=160 // loop_header
                  %s745 = sphi 0, %s749
                  %p746 = scmp.ge.s32.totalorder %s745, 1
                  %s750 = sphi %s590, %s590
                  %s751 = sphi %s717, %s717
                $region164: #{tpu_custom_call.1} parent=160 // loop_header_branch
                  %748 = sbr.rel (%p746) target = $region168
                $region165: #{tpu_custom_call.1} parent=160 // loop_body
                  _
                $region166: #{tpu_custom_call.1} parent=160 // loop_footer
                  %s749 = sadd.s32 1, %s745
                $region167: #{tpu_custom_call.1} parent=160 // loop_footer_branch
                  %744 = sbr.rel target = $region163
                $region168: #{tpu_custom_call.1} parent=160 // loop_exit
                  _
                %s753 = ssub.s32 16, 1
                loop: start=0, step=1, limit=1
                $region169: #{tpu_custom_call.1} parent=160 // loop_pre_header
                  _
                $region170: #{tpu_custom_call.1} parent=160 // loop_header
                  %s755 = sphi 0, %s759
                  %p756 = scmp.ge.s32.totalorder %s755, 1
                  %s760 = sphi %s590, %s590
                  %s761 = sphi %s717, %s717
                $region171: #{tpu_custom_call.1} parent=160 // loop_header_branch
                  %758 = sbr.rel (%p756) target = $region175
                $region172: #{tpu_custom_call.1} parent=160 // loop_body
                  %v762 = vld [vmem:[%s760] sm:%s753]
                  %763 = vst [vmem:[%s761] sm:%s753] %v762
                  %v764 = vld [vmem:[%s760 + $0x4] sm:%s753]
                  %765 = vst [vmem:[%s761 + $0x8] sm:%s753] %v764
                  %v766 = vld [vmem:[%s760 + $0x8] sm:%s753]
                  %767 = vst [vmem:[%s761 + $0x10] sm:%s753] %v766
                  %v768 = vld [vmem:[%s760 + $0xc] sm:%s753]
                  %769 = vst [vmem:[%s761 + $0x18] sm:%s753] %v768
                $region173: #{tpu_custom_call.1} parent=160 // loop_footer
                  %s759 = sadd.s32 1, %s755
                $region174: #{tpu_custom_call.1} parent=160 // loop_footer_branch
                  %754 = sbr.rel target = $region170
                $region175: #{tpu_custom_call.1} parent=160 // loop_exit
                  _
              $region161: #{tpu_custom_call.1} parent=145 // pred_fallthru
                _
            $region146: #{tpu_custom_call.1} parent=141 // pred_fallthru
              _
            // Predicated region
            $region147: #{tpu_custom_call.1} parent=141 // pred_check
              _
            $region148: #{tpu_custom_call.1} parent=141 // pred_check_branch
              %723 = sbr.rel (0) target = $region150
            $region149: #{tpu_custom_call.1} parent=141 // pred_region
              %s725 = ssub.s32 16, 1
              loop: start=0, step=1, limit=1
              $region151: #{tpu_custom_call.1} parent=149 // loop_pre_header
                _
              $region152: #{tpu_custom_call.1} parent=149 // loop_header
                %s727 = sphi 0, %s731
                %p728 = scmp.ge.s32.totalorder %s727, 1
                %s732 = sphi %s590, %s590
                %s733 = sphi %s717, %s717
              $region153: #{tpu_custom_call.1} parent=149 // loop_header_branch
                %730 = sbr.rel (%p728) target = $region157
              $region154: #{tpu_custom_call.1} parent=149 // loop_body
                %v734 = vld [vmem:[%s732] sm:%s725]
                %735 = vst [vmem:[%s733] sm:%s725] %v734
                %v736 = vld [vmem:[%s732 + $0x4] sm:%s725]
                %737 = vst [vmem:[%s733 + $0x8] sm:%s725] %v736
                %v738 = vld [vmem:[%s732 + $0x8] sm:%s725]
                %739 = vst [vmem:[%s733 + $0x10] sm:%s725] %v738
                %v740 = vld [vmem:[%s732 + $0xc] sm:%s725]
                %741 = vst [vmem:[%s733 + $0x18] sm:%s725] %v740
              $region155: #{tpu_custom_call.1} parent=149 // loop_footer
                %s731 = sadd.s32 1, %s727
              $region156: #{tpu_custom_call.1} parent=149 // loop_footer_branch
                %726 = sbr.rel target = $region152
              $region157: #{tpu_custom_call.1} parent=149 // loop_exit
                _
            $region150: #{tpu_custom_call.1} parent=141 // pred_fallthru
              _
          $region142: #{tpu_custom_call.1} parent=137 // pred_fallthru
            _
          %770 = vnop
        $region138: #{tpu_custom_call.1} parent=43 // pred_fallthru
          _
      $region44: #{tpu_custom_call.1} parent=5 // pred_fallthru
        _
      %p771 = scmp.le.s32.totalorder 2, %s19
      // Predicated region
      $region176: #{tpu_custom_call.1} parent=5 // pred_check
        %p772 = pneg %p771
      $region177: #{tpu_custom_call.1} parent=5 // pred_check_branch
        %774 = sbr.rel (%p772) target = $region179
      $region178: #{tpu_custom_call.1} parent=5 // pred_region
        %s775 = ssub.s32 %s19, 2
        // Predicated region
        $region180: #{tpu_custom_call.1} parent=178 // pred_check
          %p776 = pneg %p200
        $region181: #{tpu_custom_call.1} parent=178 // pred_check_branch
          %778 = sbr.rel (%p776) target = $region183
        $region182: #{tpu_custom_call.1} parent=178 // pred_region
          %s779 = sand.u32 %s185, 1
          %s780 = sand.u32 %s185, 1
          %s781 = smul.addr %s780, 16
          %s782 = scalar_lea.vmem [#allocation6], %s781
        $region183: #{tpu_custom_call.1} parent=178 // pred_fallthru
          _
        // Predicated region
        $region184: #{tpu_custom_call.1} parent=178 // pred_check
          %p783 = pneg %p228
        $region185: #{tpu_custom_call.1} parent=178 // pred_check_branch
          %785 = sbr.rel (%p783) target = $region187
        $region186: #{tpu_custom_call.1} parent=178 // pred_region
          %s786 = sand.u32 %s213, 1
          %s787 = sand.u32 %s213, 1
          %s788 = smul.addr %s787, 16
          %s789 = scalar_lea.vmem [#allocation7], %s788
        $region187: #{tpu_custom_call.1} parent=178 // pred_fallthru
          _
        // Predicated region
        $region188: #{tpu_custom_call.1} parent=178 // pred_check
          %p790 = pneg %p256
        $region189: #{tpu_custom_call.1} parent=178 // pred_check_branch
          %792 = sbr.rel (%p790) target = $region191
        $region190: #{tpu_custom_call.1} parent=178 // pred_region
          %s793 = sand.u32 %s241, 1
          %s794 = sand.u32 %s241, 1
          %s795 = smul.addr %s794, 16
          %s796 = scalar_lea.vmem [#allocation8], %s795
        $region191: #{tpu_custom_call.1} parent=178 // pred_fallthru
          _
      $region179: #{tpu_custom_call.1} parent=5 // pred_fallthru
        _
    $region6: #{tpu_custom_call.1} parent=1 // loop_footer
      %s23 = sadd.s32 1, %s19
    $region7: #{tpu_custom_call.1} parent=1 // loop_footer_branch
      %18 = sbr.rel target = $region3
    $region8: #{tpu_custom_call.1} parent=1 // loop_exit
      _
    %797 = vsyncpa [#allocation3], 1
    %s798 = scalar_lea.sflag [#allocation3], 1
    %799 = vsyncpa %s798, 1
    %800 = vsyncpa [#allocation5], 1

</llo_original>
